<compile_context>
chip_gen: v5e
topology: v5e:2x2
jax: 0.10.0
libtpu: 0.0.40
codegen_flags: <defaults>
</compile_context>

<pallas_src>
import functools
import math

import jax
import jax.numpy as jnp
from jax import lax
from jax.experimental import pallas as pl
from jax.experimental.pallas import tpu as pltpu


def mhatt_kernel(fill_ref, v_ref, k_ref, q_ref,
                 wv_ref, bv_ref, wk_ref, bk_ref, wq_ref, bq_ref,
                 wm_ref, bm_ref, out_ref, *, num_heads, head_dim, scale):
    # Flattened (B*L, Hdn) activations, whole batch in one fused step.
    # bf16 x bf16 projections with f32 accumulation; biases added in f32.
    vp = jnp.dot(v_ref[...], wv_ref[...],
                 preferred_element_type=jnp.float32) + bv_ref[...]
    kp = jnp.dot(k_ref[...], wk_ref[...],
                 preferred_element_type=jnp.float32) + bk_ref[...]
    qp = jnp.dot(q_ref[...], wq_ref[...],
                 preferred_element_type=jnp.float32) + bq_ref[...]

    # Hoisted mask work (done once, reused by every head): `replace` marks
    # positions whose score is overwritten by the precomputed fill value
    # (-1e9 for padded keys in the same batch, -1e30 for cross-batch blocks).
    fill = fill_ref[...]                       # (B*Lq, B*Lkv) f32
    replace = fill < -0.5

    acc = None
    for h in range(num_heads):                 # static unroll; LLO interleaves heads
        lo, hi = h * head_dim, (h + 1) * head_dim
        qh = qp[:, lo:hi]                      # (B*Lq,  Dh)
        kh = kp[:, lo:hi]                      # (B*Lkv, Dh)
        vh = vp[:, lo:hi]                      # (B*Lkv, Dh)

        # q @ k^T without materializing a transpose (contract last dims).
        s = lax.dot_general(qh, kh, (((1,), (1,)), ((), ())),
                            preferred_element_type=jnp.float32) * scale
        s = jnp.where(replace, fill, s)        # masked_fill semantics
        s = s - jnp.max(s, axis=-1, keepdims=True)
        e = jnp.exp(s)
        denom = jnp.sum(e, axis=-1, keepdims=True)
        inv = pl.reciprocal(denom, approx=True)
        inv = inv * (2.0 - denom * inv)        # one Newton step -> ~exact f32
        p = e * inv                            # softmax (dropout = identity)

        ctx = jnp.dot(p, vh, preferred_element_type=jnp.float32)   # (B*Lq, Dh)

        # Per-head partial merge projection (no concat): static sublane-aligned
        # slice of the pre-transposed merge weight, 128-lane-wide MXU output.
        part = jnp.dot(ctx.astype(jnp.bfloat16), wm_ref[lo:hi, :],
                       preferred_element_type=jnp.float32)
        acc = part if acc is None else acc + part

    out_ref[...] = acc + bm_ref[...]


def mhatt_forward(v, k, q, mask, params, num_heads):
    """v,k: (B, Lkv, Hdn) f32; q: (B, Lq, Hdn) f32; mask: (B, 1, 1, Lkv) bool."""
    B, Lkv, Hdn = v.shape
    Lq = q.shape[1]
    assert Hdn % num_heads == 0
    head_dim = Hdn // num_heads
    scale = 1.0 / math.sqrt(head_dim)

    # Flatten batch into the matmul M dimension; bf16 operands for the big
    # projections (accumulation stays f32 inside the kernel).
    v_flat = v.reshape(B * Lkv, Hdn).astype(jnp.bfloat16)
    k_flat = k.reshape(B * Lkv, Hdn).astype(jnp.bfloat16)
    q_flat = q.reshape(B * Lq, Hdn).astype(jnp.bfloat16)

    # Block-diagonal fill array at the flattened (B*Lq, B*Lkv) shape:
    #   0.0    -> keep the score
    #   -1e9   -> padded key inside the same batch (exact masked_fill value)
    #   -1e30  -> cross-batch block (exp underflows to exactly 0)
    row_b = jnp.repeat(jnp.arange(B, dtype=jnp.int32), Lq)     # batch id per query row
    col_b = jnp.repeat(jnp.arange(B, dtype=jnp.int32), Lkv)    # batch id per key col
    cross = row_b[:, None] != col_b[None, :]
    pad_cols = mask.reshape(B * Lkv)
    fill = jnp.where(cross, jnp.float32(-1e30),
                     jnp.where(pad_cols[None, :], jnp.float32(-1e9),
                               jnp.float32(0.0))).astype(jnp.float32)

    # Pre-transposed bf16 weights (out = x @ W^T + b); f32 biases as (1, Hdn).
    wv = params["W_v"].T.astype(jnp.bfloat16)
    wk = params["W_k"].T.astype(jnp.bfloat16)
    wq = params["W_q"].T.astype(jnp.bfloat16)
    wm = params["W_merge"].T.astype(jnp.bfloat16)
    bv = params["b_v"].reshape(1, Hdn).astype(jnp.float32)
    bk = params["b_k"].reshape(1, Hdn).astype(jnp.float32)
    bq = params["b_q"].reshape(1, Hdn).astype(jnp.float32)
    bm = params["b_merge"].reshape(1, Hdn).astype(jnp.float32)

    # Advisory cost estimate for XLA scheduling around the custom call.
    flops = int(2 * (2 * B * Lkv + B * Lq) * Hdn * Hdn                 # q/k/v proj
                + 4 * num_heads * (B * Lq) * (B * Lkv) * head_dim      # scores+ctx
                + 2 * (B * Lq) * Hdn * Hdn)                            # merge proj
    transcendentals = int(num_heads * (B * Lq) * (B * Lkv) + num_heads * B * Lq)
    bytes_accessed = int(fill.size * 4
                         + (v_flat.size + k_flat.size + q_flat.size) * 2
                         + 4 * Hdn * Hdn * 2 + 4 * Hdn * 4
                         + B * Lq * Hdn * 4)

    kernel = functools.partial(mhatt_kernel, num_heads=num_heads,
                               head_dim=head_dim, scale=scale)

    # Single fused step (no grid): every operand is a full-array VMEM block, so
    # there is no per-step overhead, no grid split across v7x cores, and the
    # grid-invariant weights are fetched exactly once (nothing double-buffered).
    out_flat = pl.pallas_call(
        kernel,
        out_shape=jax.ShapeDtypeStruct((B * Lq, Hdn), jnp.float32),
        cost_estimate=pl.CostEstimate(flops=flops,
                                      transcendentals=transcendentals,
                                      bytes_accessed=bytes_accessed),
    )(fill, v_flat, k_flat, q_flat, wv, bv, wk, bk, wq, bq, wm, bm)

    return out_flat.reshape(B, Lq, Hdn)


def ref_forward(v, k, q, mask, p, num_heads, head_dim):
    """Pure-JAX f32 reference mirroring PyTorch MHAtt.forward (eval mode)."""
    B, Lq, Hdn = q.shape
    lin = lambda t, W, b: t @ W.T + b
    split = lambda t: t.reshape(B, -1, num_heads, head_dim).transpose(0, 2, 1, 3)
    vv = split(lin(v, p["W_v"], p["b_v"]))
    kk = split(lin(k, p["W_k"], p["b_k"]))
    qq = split(lin(q, p["W_q"], p["b_q"]))
    scores = (qq @ jnp.swapaxes(kk, -2, -1)) / math.sqrt(head_dim)
    scores = jnp.where(mask, -1e9, scores)
    att = jax.nn.softmax(scores, axis=-1)            # dropout = identity (eval)
    ctx = (att @ vv).transpose(0, 2, 1, 3).reshape(B, Lq, Hdn)
    return lin(ctx, p["W_merge"], p["b_merge"])


if __name__ == "__main__":
    B, Lq, Lkv = 2, 8, 16
    HIDDEN, HEADS = 128, 4                    # HIDDEN_SIZE_HEAD = 32
    HEAD_DIM = HIDDEN // HEADS

    key = jax.random.PRNGKey(0)
    ks = jax.random.split(key, 12)
    bound = 1.0 / math.sqrt(HIDDEN)
    params = {
        "W_v":     jax.random.uniform(ks[0], (HIDDEN, HIDDEN), jnp.float32, -bound, bound),
        "b_v":     jax.random.uniform(ks[1], (HIDDEN,),        jnp.float32, -bound, bound),
        "W_k":     jax.random.uniform(ks[2], (HIDDEN, HIDDEN), jnp.float32, -bound, bound),
        "b_k":     jax.random.uniform(ks[3], (HIDDEN,),        jnp.float32, -bound, bound),
        "W_q":     jax.random.uniform(ks[4], (HIDDEN, HIDDEN), jnp.float32, -bound, bound),
        "b_q":     jax.random.uniform(ks[5], (HIDDEN,),        jnp.float32, -bound, bound),
        "W_merge": jax.random.uniform(ks[6], (HIDDEN, HIDDEN), jnp.float32, -bound, bound),
        "b_merge": jax.random.uniform(ks[7], (HIDDEN,),        jnp.float32, -bound, bound),
    }

    v = jax.random.normal(ks[8],  (B, Lkv, HIDDEN), jnp.float32)
    k = jax.random.normal(ks[9],  (B, Lkv, HIDDEN), jnp.float32)
    q = jax.random.normal(ks[10], (B, Lq,  HIDDEN), jnp.float32)
    # mask: True => key/value position is padded (keep several valid positions)
    mask = jnp.broadcast_to(jnp.arange(Lkv)[None, None, None, :] >= Lkv - 3,
                            (B, 1, 1, Lkv))

    out = jax.block_until_ready(mhatt_forward(v, k, q, mask, params, HEADS))
    ref = ref_forward(v, k, q, mask, params, HEADS, HEAD_DIM)

    assert out.shape == (B, Lq, HIDDEN)
    # bf16 matmul operands (f32 accumulation / f32 softmax) vs. the exact-f32
    # reference => bf16-level tolerance.  Observed max error is ~1e-3 scale;
    # 2e-2 leaves headroom across chip generations.
    assert jnp.allclose(out, ref, rtol=2e-2, atol=2e-2), \
        float(jnp.max(jnp.abs(out - ref)))

    print("KERNEL_OK")
</pallas_src>

<mosaic_0001>
module attributes {stable_mosaic.version = 11 : i64} {
  func.func @mhatt_kernel(%arg0: memref<16x32xf32, #tpu.memory_space<vmem>>, %arg1: memref<32x128xbf16, #tpu.memory_space<vmem>>, %arg2: memref<32x128xbf16, #tpu.memory_space<vmem>>, %arg3: memref<16x128xbf16, #tpu.memory_space<vmem>>, %arg4: memref<128x128xbf16, #tpu.memory_space<vmem>>, %arg5: memref<1x128xf32, #tpu.memory_space<vmem>>, %arg6: memref<128x128xbf16, #tpu.memory_space<vmem>>, %arg7: memref<1x128xf32, #tpu.memory_space<vmem>>, %arg8: memref<128x128xbf16, #tpu.memory_space<vmem>>, %arg9: memref<1x128xf32, #tpu.memory_space<vmem>>, %arg10: memref<128x128xbf16, #tpu.memory_space<vmem>>, %arg11: memref<1x128xf32, #tpu.memory_space<vmem>>, %arg12: memref<16x128xf32, #tpu.memory_space<vmem>>) attributes {dimension_semantics = [], scalar_prefetch = 0 : i64, scratch_operands = 0 : i64, tpu.core_type = #tpu.core_type<tc>} {
    %c0 = arith.constant 0 : index
    %c0_0 = arith.constant 0 : index
    %0 = vector.load %arg1[%c0, %c0_0] : memref<32x128xbf16, #tpu.memory_space<vmem>>, vector<32x128xbf16>
    %c0_1 = arith.constant 0 : index
    %c0_2 = arith.constant 0 : index
    %1 = vector.load %arg4[%c0_1, %c0_2] : memref<128x128xbf16, #tpu.memory_space<vmem>>, vector<128x128xbf16>
    %cst = arith.constant dense<0.000000e+00> : vector<32x128xf32>
    %2 = tpu.matmul %0, %1, %cst {dimension_numbers = #tpu.dot_dimension_numbers<[1], [0], [0], [1], [0, 0, 1, 1], [], []>} : vector<32x128xbf16>, vector<128x128xbf16>, vector<32x128xf32> -> vector<32x128xf32>
    %c0_3 = arith.constant 0 : index
    %c0_4 = arith.constant 0 : index
    %3 = vector.load %arg5[%c0_3, %c0_4] : memref<1x128xf32, #tpu.memory_space<vmem>>, vector<1x128xf32>
    %4 = vector.broadcast %3 : vector<1x128xf32> to vector<32x128xf32>
    %5 = arith.addf %2, %4 : vector<32x128xf32>
    %c0_5 = arith.constant 0 : index
    %c0_6 = arith.constant 0 : index
    %6 = vector.load %arg2[%c0_5, %c0_6] : memref<32x128xbf16, #tpu.memory_space<vmem>>, vector<32x128xbf16>
    %c0_7 = arith.constant 0 : index
    %c0_8 = arith.constant 0 : index
    %7 = vector.load %arg6[%c0_7, %c0_8] : memref<128x128xbf16, #tpu.memory_space<vmem>>, vector<128x128xbf16>
    %cst_9 = arith.constant dense<0.000000e+00> : vector<32x128xf32>
    %8 = tpu.matmul %6, %7, %cst_9 {dimension_numbers = #tpu.dot_dimension_numbers<[1], [0], [0], [1], [0, 0, 1, 1], [], []>} : vector<32x128xbf16>, vector<128x128xbf16>, vector<32x128xf32> -> vector<32x128xf32>
    %c0_10 = arith.constant 0 : index
    %c0_11 = arith.constant 0 : index
    %9 = vector.load %arg7[%c0_10, %c0_11] : memref<1x128xf32, #tpu.memory_space<vmem>>, vector<1x128xf32>
    %10 = vector.broadcast %9 : vector<1x128xf32> to vector<32x128xf32>
    %11 = arith.addf %8, %10 : vector<32x128xf32>
    %c0_12 = arith.constant 0 : index
    %c0_13 = arith.constant 0 : index
    %12 = vector.load %arg3[%c0_12, %c0_13] : memref<16x128xbf16, #tpu.memory_space<vmem>>, vector<16x128xbf16>
    %c0_14 = arith.constant 0 : index
    %c0_15 = arith.constant 0 : index
    %13 = vector.load %arg8[%c0_14, %c0_15] : memref<128x128xbf16, #tpu.memory_space<vmem>>, vector<128x128xbf16>
    %cst_16 = arith.constant dense<0.000000e+00> : vector<16x128xf32>
    %14 = tpu.matmul %12, %13, %cst_16 {dimension_numbers = #tpu.dot_dimension_numbers<[1], [0], [0], [1], [0, 0, 1, 1], [], []>} : vector<16x128xbf16>, vector<128x128xbf16>, vector<16x128xf32> -> vector<16x128xf32>
    %c0_17 = arith.constant 0 : index
    %c0_18 = arith.constant 0 : index
    %15 = vector.load %arg9[%c0_17, %c0_18] : memref<1x128xf32, #tpu.memory_space<vmem>>, vector<1x128xf32>
    %16 = vector.broadcast %15 : vector<1x128xf32> to vector<16x128xf32>
    %17 = arith.addf %14, %16 : vector<16x128xf32>
    %c0_19 = arith.constant 0 : index
    %c0_20 = arith.constant 0 : index
    %18 = vector.load %arg0[%c0_19, %c0_20] : memref<16x32xf32, #tpu.memory_space<vmem>>, vector<16x32xf32>
    %cst_21 = arith.constant -5.000000e-01 : f32
    %19 = vector.broadcast %cst_21 : f32 to vector<16x32xf32>
    %20 = arith.cmpf olt, %18, %19 : vector<16x32xf32>
    %21 = vector.extract_strided_slice %17 {offsets = [0, 0], sizes = [16, 32], strides = [1, 1]} : vector<16x128xf32> to vector<16x32xf32>
    %22 = vector.extract_strided_slice %11 {offsets = [0, 0], sizes = [32, 32], strides = [1, 1]} : vector<32x128xf32> to vector<32x32xf32>
    %23 = vector.extract_strided_slice %5 {offsets = [0, 0], sizes = [32, 32], strides = [1, 1]} : vector<32x128xf32> to vector<32x32xf32>
    %cst_22 = arith.constant dense<0.000000e+00> : vector<16x32xf32>
    %24 = tpu.matmul %21, %22, %cst_22 {dimension_numbers = #tpu.dot_dimension_numbers<[1], [1], [0], [0], [0, 0, 1, 0], [], []>} : vector<16x32xf32>, vector<32x32xf32>, vector<16x32xf32> -> vector<16x32xf32>
    %cst_23 = arith.constant 0.176776692 : f32
    %25 = vector.broadcast %cst_23 : f32 to vector<16x32xf32>
    %26 = arith.mulf %24, %25 : vector<16x32xf32>
    %27 = arith.select %20, %18, %26 : vector<16x32xi1>, vector<16x32xf32>
    %cst_24 = arith.constant dense<0xFF800000> : vector<16xf32>
    %28 = vector.multi_reduction <maximumf>, %27, %cst_24 [1] : vector<16x32xf32> to vector<16xf32>
    %29 = vector.shape_cast %28 : vector<16xf32> to vector<16x1xf32>
    %30 = vector.broadcast %29 : vector<16x1xf32> to vector<16x32xf32>
    %31 = arith.subf %27, %30 : vector<16x32xf32>
    %32 = math.exp %31 : vector<16x32xf32>
    %cst_25 = arith.constant dense<0.000000e+00> : vector<16xf32>
    %33 = vector.multi_reduction <add>, %32, %cst_25 [1] : vector<16x32xf32> to vector<16xf32>
    %34 = vector.shape_cast %33 : vector<16xf32> to vector<16x1xf32>
    %35 = tpu.reciprocal %34 {approx = true} : vector<16x1xf32> -> vector<16x1xf32>
    %36 = arith.mulf %34, %35 : vector<16x1xf32>
    %cst_26 = arith.constant 2.000000e+00 : f32
    %37 = vector.broadcast %cst_26 : f32 to vector<16x1xf32>
    %38 = arith.subf %37, %36 : vector<16x1xf32>
    %39 = arith.mulf %35, %38 : vector<16x1xf32>
    %40 = vector.broadcast %39 : vector<16x1xf32> to vector<16x32xf32>
    %41 = arith.mulf %32, %40 : vector<16x32xf32>
    %cst_27 = arith.constant dense<0.000000e+00> : vector<16x32xf32>
    %42 = tpu.matmul %41, %23, %cst_27 {dimension_numbers = #tpu.dot_dimension_numbers<[1], [0], [0], [1], [0, 0, 1, 1], [], []>} : vector<16x32xf32>, vector<32x32xf32>, vector<16x32xf32> -> vector<16x32xf32>
    %43 = arith.truncf %42 : vector<16x32xf32> to vector<16x32xbf16>
    %c0_28 = arith.constant 0 : index
    %c0_29 = arith.constant 0 : index
    %44 = vector.load %arg10[%c0_28, %c0_29] : memref<128x128xbf16, #tpu.memory_space<vmem>>, vector<32x128xbf16>
    %cst_30 = arith.constant dense<0.000000e+00> : vector<16x128xf32>
    %45 = tpu.matmul %43, %44, %cst_30 {dimension_numbers = #tpu.dot_dimension_numbers<[1], [0], [0], [1], [0, 0, 1, 1], [], []>} : vector<16x32xbf16>, vector<32x128xbf16>, vector<16x128xf32> -> vector<16x128xf32>
    %46 = vector.extract_strided_slice %17 {offsets = [0, 32], sizes = [16, 32], strides = [1, 1]} : vector<16x128xf32> to vector<16x32xf32>
    %47 = vector.extract_strided_slice %11 {offsets = [0, 32], sizes = [32, 32], strides = [1, 1]} : vector<32x128xf32> to vector<32x32xf32>
    %48 = vector.extract_strided_slice %5 {offsets = [0, 32], sizes = [32, 32], strides = [1, 1]} : vector<32x128xf32> to vector<32x32xf32>
    %cst_31 = arith.constant dense<0.000000e+00> : vector<16x32xf32>
    %49 = tpu.matmul %46, %47, %cst_31 {dimension_numbers = #tpu.dot_dimension_numbers<[1], [1], [0], [0], [0, 0, 1, 0], [], []>} : vector<16x32xf32>, vector<32x32xf32>, vector<16x32xf32> -> vector<16x32xf32>
    %cst_32 = arith.constant 0.176776692 : f32
    %50 = vector.broadcast %cst_32 : f32 to vector<16x32xf32>
    %51 = arith.mulf %49, %50 : vector<16x32xf32>
    %52 = arith.select %20, %18, %51 : vector<16x32xi1>, vector<16x32xf32>
    %cst_33 = arith.constant dense<0xFF800000> : vector<16xf32>
    %53 = vector.multi_reduction <maximumf>, %52, %cst_33 [1] : vector<16x32xf32> to vector<16xf32>
    %54 = vector.shape_cast %53 : vector<16xf32> to vector<16x1xf32>
    %55 = vector.broadcast %54 : vector<16x1xf32> to vector<16x32xf32>
    %56 = arith.subf %52, %55 : vector<16x32xf32>
    %57 = math.exp %56 : vector<16x32xf32>
    %cst_34 = arith.constant dense<0.000000e+00> : vector<16xf32>
    %58 = vector.multi_reduction <add>, %57, %cst_34 [1] : vector<16x32xf32> to vector<16xf32>
    %59 = vector.shape_cast %58 : vector<16xf32> to vector<16x1xf32>
    %60 = tpu.reciprocal %59 {approx = true} : vector<16x1xf32> -> vector<16x1xf32>
    %61 = arith.mulf %59, %60 : vector<16x1xf32>
    %cst_35 = arith.constant 2.000000e+00 : f32
    %62 = vector.broadcast %cst_35 : f32 to vector<16x1xf32>
    %63 = arith.subf %62, %61 : vector<16x1xf32>
    %64 = arith.mulf %60, %63 : vector<16x1xf32>
    %65 = vector.broadcast %64 : vector<16x1xf32> to vector<16x32xf32>
    %66 = arith.mulf %57, %65 : vector<16x32xf32>
    %cst_36 = arith.constant dense<0.000000e+00> : vector<16x32xf32>
    %67 = tpu.matmul %66, %48, %cst_36 {dimension_numbers = #tpu.dot_dimension_numbers<[1], [0], [0], [1], [0, 0, 1, 1], [], []>} : vector<16x32xf32>, vector<32x32xf32>, vector<16x32xf32> -> vector<16x32xf32>
    %68 = arith.truncf %67 : vector<16x32xf32> to vector<16x32xbf16>
    %c32 = arith.constant 32 : index
    %c0_37 = arith.constant 0 : index
    %69 = vector.load %arg10[%c32, %c0_37] : memref<128x128xbf16, #tpu.memory_space<vmem>>, vector<32x128xbf16>
    %cst_38 = arith.constant dense<0.000000e+00> : vector<16x128xf32>
    %70 = tpu.matmul %68, %69, %cst_38 {dimension_numbers = #tpu.dot_dimension_numbers<[1], [0], [0], [1], [0, 0, 1, 1], [], []>} : vector<16x32xbf16>, vector<32x128xbf16>, vector<16x128xf32> -> vector<16x128xf32>
    %71 = arith.addf %45, %70 : vector<16x128xf32>
    %72 = vector.extract_strided_slice %17 {offsets = [0, 64], sizes = [16, 32], strides = [1, 1]} : vector<16x128xf32> to vector<16x32xf32>
    %73 = vector.extract_strided_slice %11 {offsets = [0, 64], sizes = [32, 32], strides = [1, 1]} : vector<32x128xf32> to vector<32x32xf32>
    %74 = vector.extract_strided_slice %5 {offsets = [0, 64], sizes = [32, 32], strides = [1, 1]} : vector<32x128xf32> to vector<32x32xf32>
    %cst_39 = arith.constant dense<0.000000e+00> : vector<16x32xf32>
    %75 = tpu.matmul %72, %73, %cst_39 {dimension_numbers = #tpu.dot_dimension_numbers<[1], [1], [0], [0], [0, 0, 1, 0], [], []>} : vector<16x32xf32>, vector<32x32xf32>, vector<16x32xf32> -> vector<16x32xf32>
    %cst_40 = arith.constant 0.176776692 : f32
    %76 = vector.broadcast %cst_40 : f32 to vector<16x32xf32>
    %77 = arith.mulf %75, %76 : vector<16x32xf32>
    %78 = arith.select %20, %18, %77 : vector<16x32xi1>, vector<16x32xf32>
    %cst_41 = arith.constant dense<0xFF800000> : vector<16xf32>
    %79 = vector.multi_reduction <maximumf>, %78, %cst_41 [1] : vector<16x32xf32> to vector<16xf32>
    %80 = vector.shape_cast %79 : vector<16xf32> to vector<16x1xf32>
    %81 = vector.broadcast %80 : vector<16x1xf32> to vector<16x32xf32>
    %82 = arith.subf %78, %81 : vector<16x32xf32>
    %83 = math.exp %82 : vector<16x32xf32>
    %cst_42 = arith.constant dense<0.000000e+00> : vector<16xf32>
    %84 = vector.multi_reduction <add>, %83, %cst_42 [1] : vector<16x32xf32> to vector<16xf32>
    %85 = vector.shape_cast %84 : vector<16xf32> to vector<16x1xf32>
    %86 = tpu.reciprocal %85 {approx = true} : vector<16x1xf32> -> vector<16x1xf32>
    %87 = arith.mulf %85, %86 : vector<16x1xf32>
    %cst_43 = arith.constant 2.000000e+00 : f32
    %88 = vector.broadcast %cst_43 : f32 to vector<16x1xf32>
    %89 = arith.subf %88, %87 : vector<16x1xf32>
    %90 = arith.mulf %86, %89 : vector<16x1xf32>
    %91 = vector.broadcast %90 : vector<16x1xf32> to vector<16x32xf32>
    %92 = arith.mulf %83, %91 : vector<16x32xf32>
    %cst_44 = arith.constant dense<0.000000e+00> : vector<16x32xf32>
    %93 = tpu.matmul %92, %74, %cst_44 {dimension_numbers = #tpu.dot_dimension_numbers<[1], [0], [0], [1], [0, 0, 1, 1], [], []>} : vector<16x32xf32>, vector<32x32xf32>, vector<16x32xf32> -> vector<16x32xf32>
    %94 = arith.truncf %93 : vector<16x32xf32> to vector<16x32xbf16>
    %c64 = arith.constant 64 : index
    %c0_45 = arith.constant 0 : index
    %95 = vector.load %arg10[%c64, %c0_45] : memref<128x128xbf16, #tpu.memory_space<vmem>>, vector<32x128xbf16>
    %cst_46 = arith.constant dense<0.000000e+00> : vector<16x128xf32>
    %96 = tpu.matmul %94, %95, %cst_46 {dimension_numbers = #tpu.dot_dimension_numbers<[1], [0], [0], [1], [0, 0, 1, 1], [], []>} : vector<16x32xbf16>, vector<32x128xbf16>, vector<16x128xf32> -> vector<16x128xf32>
    %97 = arith.addf %71, %96 : vector<16x128xf32>
    %98 = vector.extract_strided_slice %17 {offsets = [0, 96], sizes = [16, 32], strides = [1, 1]} : vector<16x128xf32> to vector<16x32xf32>
    %99 = vector.extract_strided_slice %11 {offsets = [0, 96], sizes = [32, 32], strides = [1, 1]} : vector<32x128xf32> to vector<32x32xf32>
    %100 = vector.extract_strided_slice %5 {offsets = [0, 96], sizes = [32, 32], strides = [1, 1]} : vector<32x128xf32> to vector<32x32xf32>
    %cst_47 = arith.constant dense<0.000000e+00> : vector<16x32xf32>
    %101 = tpu.matmul %98, %99, %cst_47 {dimension_numbers = #tpu.dot_dimension_numbers<[1], [1], [0], [0], [0, 0, 1, 0], [], []>} : vector<16x32xf32>, vector<32x32xf32>, vector<16x32xf32> -> vector<16x32xf32>
    %cst_48 = arith.constant 0.176776692 : f32
    %102 = vector.broadcast %cst_48 : f32 to vector<16x32xf32>
    %103 = arith.mulf %101, %102 : vector<16x32xf32>
    %104 = arith.select %20, %18, %103 : vector<16x32xi1>, vector<16x32xf32>
    %cst_49 = arith.constant dense<0xFF800000> : vector<16xf32>
    %105 = vector.multi_reduction <maximumf>, %104, %cst_49 [1] : vector<16x32xf32> to vector<16xf32>
    %106 = vector.shape_cast %105 : vector<16xf32> to vector<16x1xf32>
    %107 = vector.broadcast %106 : vector<16x1xf32> to vector<16x32xf32>
    %108 = arith.subf %104, %107 : vector<16x32xf32>
    %109 = math.exp %108 : vector<16x32xf32>
    %cst_50 = arith.constant dense<0.000000e+00> : vector<16xf32>
    %110 = vector.multi_reduction <add>, %109, %cst_50 [1] : vector<16x32xf32> to vector<16xf32>
    %111 = vector.shape_cast %110 : vector<16xf32> to vector<16x1xf32>
    %112 = tpu.reciprocal %111 {approx = true} : vector<16x1xf32> -> vector<16x1xf32>
    %113 = arith.mulf %111, %112 : vector<16x1xf32>
    %cst_51 = arith.constant 2.000000e+00 : f32
    %114 = vector.broadcast %cst_51 : f32 to vector<16x1xf32>
    %115 = arith.subf %114, %113 : vector<16x1xf32>
    %116 = arith.mulf %112, %115 : vector<16x1xf32>
    %117 = vector.broadcast %116 : vector<16x1xf32> to vector<16x32xf32>
    %118 = arith.mulf %109, %117 : vector<16x32xf32>
    %cst_52 = arith.constant dense<0.000000e+00> : vector<16x32xf32>
    %119 = tpu.matmul %118, %100, %cst_52 {dimension_numbers = #tpu.dot_dimension_numbers<[1], [0], [0], [1], [0, 0, 1, 1], [], []>} : vector<16x32xf32>, vector<32x32xf32>, vector<16x32xf32> -> vector<16x32xf32>
    %120 = arith.truncf %119 : vector<16x32xf32> to vector<16x32xbf16>
    %c96 = arith.constant 96 : index
    %c0_53 = arith.constant 0 : index
    %121 = vector.load %arg10[%c96, %c0_53] : memref<128x128xbf16, #tpu.memory_space<vmem>>, vector<32x128xbf16>
    %cst_54 = arith.constant dense<0.000000e+00> : vector<16x128xf32>
    %122 = tpu.matmul %120, %121, %cst_54 {dimension_numbers = #tpu.dot_dimension_numbers<[1], [0], [0], [1], [0, 0, 1, 1], [], []>} : vector<16x32xbf16>, vector<32x128xbf16>, vector<16x128xf32> -> vector<16x128xf32>
    %123 = arith.addf %97, %122 : vector<16x128xf32>
    %c0_55 = arith.constant 0 : index
    %c0_56 = arith.constant 0 : index
    %124 = vector.load %arg11[%c0_55, %c0_56] : memref<1x128xf32, #tpu.memory_space<vmem>>, vector<1x128xf32>
    %125 = vector.broadcast %124 : vector<1x128xf32> to vector<16x128xf32>
    %126 = arith.addf %123, %125 : vector<16x128xf32>
    %c0_57 = arith.constant 0 : index
    %c0_58 = arith.constant 0 : index
    %127 = vector.load %arg12[%c0_57, %c0_58] : memref<16x128xf32, #tpu.memory_space<vmem>>, vector<16x128xf32>
    tpu.vector_store %arg12[%c0_57, %c0_58], %126 {strides = array<i32>} : memref<16x128xf32, #tpu.memory_space<vmem>>, vector<16x128xf32>,
    return
  }
}

</mosaic_0001>

<llo_original>
// kernel: tpu_custom_call.1
$region0: #{tpu_custom_call.1}
  #allocation0 [shape = 'u32[]', space=smem, size = 0x4, offset = 0x4, fixed_abs, tag = 'smem constant byte address 0x4 - core index']
  #allocation1 [shape = 'u32[72,128]{1,0:T(1,128)}', space=vmem, size = 0x9000, scoped, tag = 'internal scratch']
  %s0 = inlined_call_operand.hbm [shape: f32[16,32], index: 0, kind: input, shape index: {}]
  %s1 = inlined_call_operand.hbm [shape: bf16[32,128], index: 1, kind: input, shape index: {}]
  %s2 = inlined_call_operand.hbm [shape: bf16[32,128], index: 2, kind: input, shape index: {}]
  %s3 = inlined_call_operand.hbm [shape: bf16[16,128], index: 3, kind: input, shape index: {}]
  %s4 = inlined_call_operand.hbm [shape: bf16[128,128], index: 4, kind: input, shape index: {}]
  %s5 = inlined_call_operand.vmem [shape: f32[1,128], index: 5, kind: input, shape index: {}]
  %s6 = inlined_call_operand.hbm [shape: bf16[128,128], index: 6, kind: input, shape index: {}]
  %s7 = inlined_call_operand.vmem [shape: f32[1,128], index: 7, kind: input, shape index: {}]
  %s8 = inlined_call_operand.hbm [shape: bf16[128,128], index: 8, kind: input, shape index: {}]
  %s9 = inlined_call_operand.vmem [shape: f32[1,128], index: 9, kind: input, shape index: {}]
  %s10 = inlined_call_operand.hbm [shape: bf16[128,128], index: 10, kind: input, shape index: {}]
  %s11 = inlined_call_operand.vmem [shape: f32[1,128], index: 11, kind: input, shape index: {}]
  %s12 = inlined_call_operand.hbm [shape: f32[16,128], index: 12, kind: output, shape index: {}]
  %s13 = sld [smem:[#allocation0]]
  $region90: #{tpu_custom_call.1} parent=0
    _
  %s15 = ssub.s32 1, %s13
  %s16 = scalar_select 0, %s15, %s13
  $region1: #{tpu_custom_call.1} parent=0
    #allocation2 [shape = 'u8[8192]{0}', space=vmem, size = 0x2000, scoped, tag = 'input window, operand 0, single buffered']
    #allocation3 [shape = 's32[1]{0}', space=sflag, size = 0x4, scoped, tag = 'scoped memory for tpu_custom_call.1']
    #allocation4 [shape = 's32[1]{0}', space=sflag, size = 0x4, scoped, tag = 'scoped memory for tpu_custom_call.1']
    #allocation5 [shape = 'u8[8192]{0}', space=vmem, size = 0x2000, scoped, tag = 'input window, operand 1, single buffered']
    #allocation6 [shape = 's32[1]{0}', space=sflag, size = 0x4, scoped, tag = 'scoped memory for tpu_custom_call.1']
    #allocation7 [shape = 'u8[8192]{0}', space=vmem, size = 0x2000, scoped, tag = 'input window, operand 2, single buffered']
    #allocation8 [shape = 'u8[4096]{0}', space=vmem, size = 0x1000, scoped, tag = 'input window, operand 3, single buffered']
    #allocation9 [shape = 's32[1]{0}', space=sflag, size = 0x4, scoped, tag = 'scoped memory for tpu_custom_call.1']
    #allocation10 [shape = 'u8[32768]{0}', space=vmem, size = 0x8000, scoped, tag = 'input window, operand 4, single buffered']
    #allocation11 [shape = 'u8[32768]{0}', space=vmem, size = 0x8000, scoped, tag = 'input window, operand 6, single buffered']
    #allocation12 [shape = 's32[1]{0}', space=sflag, size = 0x4, scoped, tag = 'scoped memory for tpu_custom_call.1']
    #allocation13 [shape = 'u8[32768]{0}', space=vmem, size = 0x8000, scoped, tag = 'input window, operand 8, single buffered']
    #allocation14 [shape = 'u8[32768]{0}', space=vmem, size = 0x8000, scoped, tag = 'input window, operand 10, single buffered']
    #allocation15 [shape = 's32[1]{0}', space=sflag, size = 0x4, scoped, tag = 'scoped memory for tpu_custom_call.1']
    #allocation16 [shape = 'u8[8192]{0}', space=vmem, size = 0x2000, scoped, tag = 'output window, operand 0, single buffered']
    %17 = vsyncpa [#allocation3], 0
    %18 = vsyncpa [#allocation6], 0
    %19 = vsyncpa [#allocation9], 0
    %20 = vsyncpa [#allocation12], 0
    %21 = vsyncpa [#allocation15], 0
    %22 = vsyncpa [#allocation4], 0
    // Predicated region
    $region2: #{tpu_custom_call.1} parent=1 // pred_check
      _
    $region3: #{tpu_custom_call.1} parent=1 // pred_check_branch
      %24 = sbr.rel (0) target = $region5
    $region4: #{tpu_custom_call.1} parent=1 // pred_region
      %26 = vsyncadd [#allocation3], 0
      %s27 = sshll.u32 %s0, 4
      %s28 = int_to_ptr.hbm [resolvable:$true] %s27
      %s29 = sshll.u32 [#allocation2], 4
      %s30 = int_to_ptr.vmem [resolvable:$true] %s29
      %35 = dma.hbm_to_vmem [thread:$0]  %s28, 256, %s30, [#allocation3], 128, 128, 8
    $region5: #{tpu_custom_call.1} parent=1 // pred_fallthru
      _
    // Predicated region
    $region6: #{tpu_custom_call.1} parent=1 // pred_check
      _
    $region7: #{tpu_custom_call.1} parent=1 // pred_check_branch
      %37 = sbr.rel (0) target = $region9
    $region8: #{tpu_custom_call.1} parent=1 // pred_region
      %39 = vsyncadd [#allocation6], 0
      %s40 = sshll.u32 %s1, 4
      %s41 = int_to_ptr.hbm [resolvable:$true] %s40
      %s42 = sshll.u32 [#allocation5], 4
      %s43 = int_to_ptr.vmem [resolvable:$true] %s42
      %48 = dma.hbm_to_vmem [thread:$0]  %s41, 256, %s43, [#allocation6], 64, 64, 4
    $region9: #{tpu_custom_call.1} parent=1 // pred_fallthru
      _
    // Predicated region
    $region10: #{tpu_custom_call.1} parent=1 // pred_check
      _
    $region11: #{tpu_custom_call.1} parent=1 // pred_check_branch
      %50 = sbr.rel (0) target = $region13
    $region12: #{tpu_custom_call.1} parent=1 // pred_region
      %52 = vsyncadd [#allocation6], 0
      %s53 = sshll.u32 %s2, 4
      %s54 = int_to_ptr.hbm [resolvable:$true] %s53
      %s55 = sshll.u32 [#allocation7], 4
      %s56 = int_to_ptr.vmem [resolvable:$true] %s55
      %61 = dma.hbm_to_vmem [thread:$0]  %s54, 256, %s56, [#allocation6], 64, 64, 4
    $region13: #{tpu_custom_call.1} parent=1 // pred_fallthru
      _
    // Predicated region
    $region14: #{tpu_custom_call.1} parent=1 // pred_check
      _
    $region15: #{tpu_custom_call.1} parent=1 // pred_check_branch
      %63 = sbr.rel (0) target = $region17
    $region16: #{tpu_custom_call.1} parent=1 // pred_region
      %65 = vsyncadd [#allocation9], 0
      %s66 = sshll.u32 %s3, 4
      %s67 = int_to_ptr.hbm [resolvable:$true] %s66
      %s68 = sshll.u32 [#allocation8], 4
      %s69 = int_to_ptr.vmem [resolvable:$true] %s68
      %74 = dma.hbm_to_vmem [thread:$0]  %s67, 128, %s69, [#allocation9], 64, 64, 4
    $region17: #{tpu_custom_call.1} parent=1 // pred_fallthru
      _
    // Predicated region
    $region18: #{tpu_custom_call.1} parent=1 // pred_check
      _
    $region19: #{tpu_custom_call.1} parent=1 // pred_check_branch
      %76 = sbr.rel (0) target = $region21
    $region20: #{tpu_custom_call.1} parent=1 // pred_region
      %78 = vsyncadd [#allocation9], 0
      %s79 = sshll.u32 %s4, 4
      %s80 = int_to_ptr.hbm [resolvable:$true] %s79
      %s81 = sshll.u32 [#allocation10], 4
      %s82 = int_to_ptr.vmem [resolvable:$true] %s81
      %87 = dma.hbm_to_vmem [thread:$0]  %s80, 1024, %s82, [#allocation9], 64, 64, 4
    $region21: #{tpu_custom_call.1} parent=1 // pred_fallthru
      _
    // Predicated region
    $region22: #{tpu_custom_call.1} parent=1 // pred_check
      _
    $region23: #{tpu_custom_call.1} parent=1 // pred_check_branch
      %89 = sbr.rel (0) target = $region25
    $region24: #{tpu_custom_call.1} parent=1 // pred_region
      _
    $region25: #{tpu_custom_call.1} parent=1 // pred_fallthru
      _
    // Predicated region
    $region26: #{tpu_custom_call.1} parent=1 // pred_check
      _
    $region27: #{tpu_custom_call.1} parent=1 // pred_check_branch
      %91 = sbr.rel (0) target = $region29
    $region28: #{tpu_custom_call.1} parent=1 // pred_region
      %93 = vsyncadd [#allocation12], 0
      %s94 = sshll.u32 %s6, 4
      %s95 = int_to_ptr.hbm [resolvable:$true] %s94
      %s96 = sshll.u32 [#allocation11], 4
      %s97 = int_to_ptr.vmem [resolvable:$true] %s96
      %102 = dma.hbm_to_vmem [thread:$0]  %s95, 1024, %s97, [#allocation12], 64, 64, 4
    $region29: #{tpu_custom_call.1} parent=1 // pred_fallthru
      _
    // Predicated region
    $region30: #{tpu_custom_call.1} parent=1 // pred_check
      _
    $region31: #{tpu_custom_call.1} parent=1 // pred_check_branch
      %104 = sbr.rel (0) target = $region33
    $region32: #{tpu_custom_call.1} parent=1 // pred_region
      _
    $region33: #{tpu_custom_call.1} parent=1 // pred_fallthru
      _
    // Predicated region
    $region34: #{tpu_custom_call.1} parent=1 // pred_check
      _
    $region35: #{tpu_custom_call.1} parent=1 // pred_check_branch
      %106 = sbr.rel (0) target = $region37
    $region36: #{tpu_custom_call.1} parent=1 // pred_region
      %108 = vsyncadd [#allocation12], 0
      %s109 = sshll.u32 %s8, 4
      %s110 = int_to_ptr.hbm [resolvable:$true] %s109
      %s111 = sshll.u32 [#allocation13], 4
      %s112 = int_to_ptr.vmem [resolvable:$true] %s111
      %117 = dma.hbm_to_vmem [thread:$0]  %s110, 1024, %s112, [#allocation12], 64, 64, 4
    $region37: #{tpu_custom_call.1} parent=1 // pred_fallthru
      _
    // Predicated region
    $region38: #{tpu_custom_call.1} parent=1 // pred_check
      _
    $region39: #{tpu_custom_call.1} parent=1 // pred_check_branch
      %119 = sbr.rel (0) target = $region41
    $region40: #{tpu_custom_call.1} parent=1 // pred_region
      _
    $region41: #{tpu_custom_call.1} parent=1 // pred_fallthru
      _
    // Predicated region
    $region42: #{tpu_custom_call.1} parent=1 // pred_check
      _
    $region43: #{tpu_custom_call.1} parent=1 // pred_check_branch
      %121 = sbr.rel (0) target = $region45
    $region44: #{tpu_custom_call.1} parent=1 // pred_region
      %123 = vsyncadd [#allocation15], 0
      %s124 = sshll.u32 %s10, 4
      %s125 = int_to_ptr.hbm [resolvable:$true] %s124
      %s126 = sshll.u32 [#allocation14], 4
      %s127 = int_to_ptr.vmem [resolvable:$true] %s126
      %132 = dma.hbm_to_vmem [thread:$0]  %s125, 1024, %s127, [#allocation15], 64, 64, 4
    $region45: #{tpu_custom_call.1} parent=1 // pred_fallthru
      _
    // Predicated region
    $region46: #{tpu_custom_call.1} parent=1 // pred_check
      _
    $region47: #{tpu_custom_call.1} parent=1 // pred_check_branch
      %134 = sbr.rel (0) target = $region49
    $region48: #{tpu_custom_call.1} parent=1 // pred_region
      _
    $region49: #{tpu_custom_call.1} parent=1 // pred_fallthru
      _
    // Predicated region
    $region50: #{tpu_custom_call.1} parent=1 // pred_check
      _
    $region51: #{tpu_custom_call.1} parent=1 // pred_check_branch
      %136 = sbr.rel (0) target = $region53
    $region52: #{tpu_custom_call.1} parent=1 // pred_region
      %138 = dma.done [#allocation3], 256
    $region53: #{tpu_custom_call.1} parent=1 // pred_fallthru
      _
    // Predicated region
    $region54: #{tpu_custom_call.1} parent=1 // pred_check
      _
    $region55: #{tpu_custom_call.1} parent=1 // pred_check_branch
      %140 = sbr.rel (0) target = $region57
    $region56: #{tpu_custom_call.1} parent=1 // pred_region
      %142 = dma.done [#allocation6], 256
    $region57: #{tpu_custom_call.1} parent=1 // pred_fallthru
      _
    // Predicated region
    $region58: #{tpu_custom_call.1} parent=1 // pred_check
      _
    $region59: #{tpu_custom_call.1} parent=1 // pred_check_branch
      %144 = sbr.rel (0) target = $region61
    $region60: #{tpu_custom_call.1} parent=1 // pred_region
      %146 = dma.done [#allocation6], 256
    $region61: #{tpu_custom_call.1} parent=1 // pred_fallthru
      _
    // Predicated region
    $region62: #{tpu_custom_call.1} parent=1 // pred_check
      _
    $region63: #{tpu_custom_call.1} parent=1 // pred_check_branch
      %148 = sbr.rel (0) target = $region65
    $region64: #{tpu_custom_call.1} parent=1 // pred_region
      %150 = dma.done [#allocation9], 128
    $region65: #{tpu_custom_call.1} parent=1 // pred_fallthru
      _
    // Predicated region
    $region66: #{tpu_custom_call.1} parent=1 // pred_check
      _
    $region67: #{tpu_custom_call.1} parent=1 // pred_check_branch
      %152 = sbr.rel (0) target = $region69
    $region68: #{tpu_custom_call.1} parent=1 // pred_region
      %154 = dma.done [#allocation9], 1024
    $region69: #{tpu_custom_call.1} parent=1 // pred_fallthru
      _
    // Predicated region
    $region70: #{tpu_custom_call.1} parent=1 // pred_check
      _
    $region71: #{tpu_custom_call.1} parent=1 // pred_check_branch
      %156 = sbr.rel (0) target = $region73
    $region72: #{tpu_custom_call.1} parent=1 // pred_region
      %158 = dma.done [#allocation12], 1024
    $region73: #{tpu_custom_call.1} parent=1 // pred_fallthru
      _
    // Predicated region
    $region74: #{tpu_custom_call.1} parent=1 // pred_check
      _
    $region75: #{tpu_custom_call.1} parent=1 // pred_check_branch
      %160 = sbr.rel (0) target = $region77
    $region76: #{tpu_custom_call.1} parent=1 // pred_region
      %162 = dma.done [#allocation12], 1024
    $region77: #{tpu_custom_call.1} parent=1 // pred_fallthru
      _
    // Predicated region
    $region78: #{tpu_custom_call.1} parent=1 // pred_check
      _
    $region79: #{tpu_custom_call.1} parent=1 // pred_check_branch
      %164 = sbr.rel (0) target = $region81
    $region80: #{tpu_custom_call.1} parent=1 // pred_region
      %166 = dma.done [#allocation15], 1024
    $region81: #{tpu_custom_call.1} parent=1 // pred_fallthru
      _
    %v168 = vld [vmem:[#allocation5] sm:$0xf]
    %v169 = vld [vmem:[#allocation5 + $0x4] sm:$0xf]
    %v170 = vld [vmem:[#allocation5 + $0x8] sm:$0xf]
    %v171 = vld [vmem:[#allocation5 + $0xc] sm:$0xf]
    %v172 = vld [vmem:[#allocation10] sm:$0xf]
    %v173 = vld [vmem:[#allocation10 + $0x4] sm:$0xf]
    %v174 = vld [vmem:[#allocation10 + $0x8] sm:$0xf]
    %v175 = vld [vmem:[#allocation10 + $0xc] sm:$0xf]
    %v176 = vld [vmem:[#allocation10 + $0x10] sm:$0xf]
    %v177 = vld [vmem:[#allocation10 + $0x14] sm:$0xf]
    %v178 = vld [vmem:[#allocation10 + $0x18] sm:$0xf]
    %v179 = vld [vmem:[#allocation10 + $0x1c] sm:$0xf]
    %v180 = vld [vmem:[#allocation10 + $0x20] sm:$0xf]
    %v181 = vld [vmem:[#allocation10 + $0x24] sm:$0xf]
    %v182 = vld [vmem:[#allocation10 + $0x28] sm:$0xf]
    %v183 = vld [vmem:[#allocation10 + $0x2c] sm:$0xf]
    %v184 = vld [vmem:[#allocation10 + $0x30] sm:$0xf]
    %v185 = vld [vmem:[#allocation10 + $0x34] sm:$0xf]
    %v186 = vld [vmem:[#allocation10 + $0x38] sm:$0xf]
    %v187 = vld [vmem:[#allocation10 + $0x3c] sm:$0xf]
    %v188 = vld [vmem:[%s5] sm:$0x1]
    %v190 = vperm.slane %v188, 0
    %v196 = vunpack.c.l.b16 %v168
    %v197 = vunpack.c.l.b16 %v169
    %v198 = vunpack.c.l.b16 %v170
    %v199 = vunpack.c.l.b16 %v171
    %v200 = vpack.c.b16 %v197, %v196
    %v201 = vpack.c.b16 %v199, %v198
    %v220 = vunpack.c.l.b16 %v172
    %v221 = vunpack.c.l.b16 %v173
    %v222 = vunpack.c.l.b16 %v174
    %v223 = vunpack.c.l.b16 %v175
    %v224 = vunpack.c.l.b16 %v176
    %v225 = vunpack.c.l.b16 %v177
    %v226 = vunpack.c.l.b16 %v178
    %v227 = vunpack.c.l.b16 %v179
    %v228 = vunpack.c.l.b16 %v180
    %v229 = vunpack.c.l.b16 %v181
    %v230 = vunpack.c.l.b16 %v182
    %v231 = vunpack.c.l.b16 %v183
    %v232 = vunpack.c.l.b16 %v184
    %v233 = vunpack.c.l.b16 %v185
    %v234 = vunpack.c.l.b16 %v186
    %v235 = vunpack.c.l.b16 %v187
    %v236 = vpack.c.b16 %v221, %v220
    %v237 = vpack.c.b16 %v223, %v222
    %v238 = vpack.c.b16 %v225, %v224
    %v239 = vpack.c.b16 %v227, %v226
    %v240 = vpack.c.b16 %v229, %v228
    %v241 = vpack.c.b16 %v231, %v230
    %v242 = vpack.c.b16 %v233, %v232
    %v243 = vpack.c.b16 %v235, %v234
    %252 = vmatpush.bf16.msra.mxu0 %v243
    %253 = vmatpush.bf16.msra.mxu0 %v242
    %254 = vmatpush.bf16.msra.mxu0 %v241
    %255 = vmatpush.bf16.msra.mxu0 %v240
    %256 = vmatpush.bf16.msra.mxu0 %v239
    %257 = vmatpush.bf16.msra.mxu0 %v238
    %258 = vmatpush.bf16.msra.mxu0 %v237
    %259 = vmatpush.bf16.msra.mxu0 %v236
    %260 = vmatmul.bf16.gmra.mxu0 %v200
    %v261 = vpop.f32.mrf.mxu0
    %v262 = vadd.f32 %v190, %v261
    %v263 = vpop.f32.mrf.mxu0
    %v264 = vadd.f32 %v190, %v263
    %265 = vmatmul.bf16.gmra.mxu0 %v201
    %v266 = vpop.f32.mrf.mxu0
    %v267 = vadd.f32 %v190, %v266
    %v268 = vpop.f32.mrf.mxu0
    %v269 = vadd.f32 %v190, %v268
    %270 = vdwg.mxu0
    %v271 = vld [vmem:[#allocation7] sm:$0xf]
    %v272 = vld [vmem:[#allocation7 + $0x4] sm:$0xf]
    %v273 = vld [vmem:[#allocation7 + $0x8] sm:$0xf]
    %v274 = vld [vmem:[#allocation7 + $0xc] sm:$0xf]
    %v275 = vld [vmem:[#allocation11] sm:$0xf]
    %v276 = vld [vmem:[#allocation11 + $0x4] sm:$0xf]
    %v277 = vld [vmem:[#allocation11 + $0x8] sm:$0xf]
    %v278 = vld [vmem:[#allocation11 + $0xc] sm:$0xf]
    %v279 = vld [vmem:[#allocation11 + $0x10] sm:$0xf]
    %v280 = vld [vmem:[#allocation11 + $0x14] sm:$0xf]
    %v281 = vld [vmem:[#allocation11 + $0x18] sm:$0xf]
    %v282 = vld [vmem:[#allocation11 + $0x1c] sm:$0xf]
    %v283 = vld [vmem:[#allocation11 + $0x20] sm:$0xf]
    %v284 = vld [vmem:[#allocation11 + $0x24] sm:$0xf]
    %v285 = vld [vmem:[#allocation11 + $0x28] sm:$0xf]
    %v286 = vld [vmem:[#allocation11 + $0x2c] sm:$0xf]
    %v287 = vld [vmem:[#allocation11 + $0x30] sm:$0xf]
    %v288 = vld [vmem:[#allocation11 + $0x34] sm:$0xf]
    %v289 = vld [vmem:[#allocation11 + $0x38] sm:$0xf]
    %v290 = vld [vmem:[#allocation11 + $0x3c] sm:$0xf]
    %v291 = vld [vmem:[%s7] sm:$0x1]
    %v293 = vperm.slane %v291, 0
    %v299 = vunpack.c.l.b16 %v271
    %v300 = vunpack.c.l.b16 %v272
    %v301 = vunpack.c.l.b16 %v273
    %v302 = vunpack.c.l.b16 %v274
    %v303 = vpack.c.b16 %v300, %v299
    %v304 = vpack.c.b16 %v302, %v301
    %v323 = vunpack.c.l.b16 %v275
    %v324 = vunpack.c.l.b16 %v276
    %v325 = vunpack.c.l.b16 %v277
    %v326 = vunpack.c.l.b16 %v278
    %v327 = vunpack.c.l.b16 %v279
    %v328 = vunpack.c.l.b16 %v280
    %v329 = vunpack.c.l.b16 %v281
    %v330 = vunpack.c.l.b16 %v282
    %v331 = vunpack.c.l.b16 %v283
    %v332 = vunpack.c.l.b16 %v284
    %v333 = vunpack.c.l.b16 %v285
    %v334 = vunpack.c.l.b16 %v286
    %v335 = vunpack.c.l.b16 %v287
    %v336 = vunpack.c.l.b16 %v288
    %v337 = vunpack.c.l.b16 %v289
    %v338 = vunpack.c.l.b16 %v290
    %v339 = vpack.c.b16 %v324, %v323
    %v340 = vpack.c.b16 %v326, %v325
    %v341 = vpack.c.b16 %v328, %v327
    %v342 = vpack.c.b16 %v330, %v329
    %v343 = vpack.c.b16 %v332, %v331
    %v344 = vpack.c.b16 %v334, %v333
    %v345 = vpack.c.b16 %v336, %v335
    %v346 = vpack.c.b16 %v338, %v337
    %355 = vmatpush.bf16.msra.mxu0 %v346
    %356 = vmatpush.bf16.msra.mxu0 %v345
    %357 = vmatpush.bf16.msra.mxu0 %v344
    %358 = vmatpush.bf16.msra.mxu0 %v343
    %359 = vmatpush.bf16.msra.mxu0 %v342
    %360 = vmatpush.bf16.msra.mxu0 %v341
    %361 = vmatpush.bf16.msra.mxu0 %v340
    %362 = vmatpush.bf16.msra.mxu0 %v339
    %363 = vmatmul.bf16.gmra.mxu0 %v303
    %v364 = vpop.f32.mrf.mxu0
    %v365 = vadd.f32 %v293, %v364
    %v366 = vpop.f32.mrf.mxu0
    %v367 = vadd.f32 %v293, %v366
    %368 = vmatmul.bf16.gmra.mxu0 %v304
    %v369 = vpop.f32.mrf.mxu0
    %v370 = vadd.f32 %v293, %v369
    %v371 = vpop.f32.mrf.mxu0
    %v372 = vadd.f32 %v293, %v371
    %373 = vdwg.mxu0
    %v374 = vld [vmem:[#allocation8] sm:$0xf]
    %v375 = vld [vmem:[#allocation8 + $0x4] sm:$0xf]
    %v376 = vld [vmem:[#allocation13] sm:$0xf]
    %v377 = vld [vmem:[#allocation13 + $0x4] sm:$0xf]
    %v378 = vld [vmem:[#allocation13 + $0x8] sm:$0xf]
    %v379 = vld [vmem:[#allocation13 + $0xc] sm:$0xf]
    %v380 = vld [vmem:[#allocation13 + $0x10] sm:$0xf]
    %v381 = vld [vmem:[#allocation13 + $0x14] sm:$0xf]
    %v382 = vld [vmem:[#allocation13 + $0x18] sm:$0xf]
    %v383 = vld [vmem:[#allocation13 + $0x1c] sm:$0xf]
    %v384 = vld [vmem:[#allocation13 + $0x20] sm:$0xf]
    %v385 = vld [vmem:[#allocation13 + $0x24] sm:$0xf]
    %v386 = vld [vmem:[#allocation13 + $0x28] sm:$0xf]
    %v387 = vld [vmem:[#allocation13 + $0x2c] sm:$0xf]
    %v388 = vld [vmem:[#allocation13 + $0x30] sm:$0xf]
    %v389 = vld [vmem:[#allocation13 + $0x34] sm:$0xf]
    %v390 = vld [vmem:[#allocation13 + $0x38] sm:$0xf]
    %v391 = vld [vmem:[#allocation13 + $0x3c] sm:$0xf]
    %v392 = vld [vmem:[%s9] sm:$0x1]
    %v394 = vperm.slane %v392, 0
    %v398 = vunpack.c.l.b16 %v374
    %v399 = vunpack.c.l.b16 %v375
    %v400 = vpack.c.b16 %v399, %v398
    %v418 = vunpack.c.l.b16 %v376
    %v419 = vunpack.c.l.b16 %v377
    %v420 = vunpack.c.l.b16 %v378
    %v421 = vunpack.c.l.b16 %v379
    %v422 = vunpack.c.l.b16 %v380
    %v423 = vunpack.c.l.b16 %v381
    %v424 = vunpack.c.l.b16 %v382
    %v425 = vunpack.c.l.b16 %v383
    %v426 = vunpack.c.l.b16 %v384
    %v427 = vunpack.c.l.b16 %v385
    %v428 = vunpack.c.l.b16 %v386
    %v429 = vunpack.c.l.b16 %v387
    %v430 = vunpack.c.l.b16 %v388
    %v431 = vunpack.c.l.b16 %v389
    %v432 = vunpack.c.l.b16 %v390
    %v433 = vunpack.c.l.b16 %v391
    %v434 = vpack.c.b16 %v419, %v418
    %v435 = vpack.c.b16 %v421, %v420
    %v436 = vpack.c.b16 %v423, %v422
    %v437 = vpack.c.b16 %v425, %v424
    %v438 = vpack.c.b16 %v427, %v426
    %v439 = vpack.c.b16 %v429, %v428
    %v440 = vpack.c.b16 %v431, %v430
    %v441 = vpack.c.b16 %v433, %v432
    %450 = vmatpush.bf16.msra.mxu0 %v441
    %451 = vmatpush.bf16.msra.mxu0 %v440
    %452 = vmatpush.bf16.msra.mxu0 %v439
    %453 = vmatpush.bf16.msra.mxu0 %v438
    %454 = vmatpush.bf16.msra.mxu0 %v437
    %455 = vmatpush.bf16.msra.mxu0 %v436
    %456 = vmatpush.bf16.msra.mxu0 %v435
    %457 = vmatpush.bf16.msra.mxu0 %v434
    %458 = vmatmul.bf16.gmra.mxu0 %v400
    %v459 = vpop.f32.mrf.mxu0
    %v460 = vadd.f32 %v394, %v459
    %v461 = vpop.f32.mrf.mxu0
    %v462 = vadd.f32 %v394, %v461
    %463 = vdwg.mxu0
    %v464 = vld [vmem:[#allocation2] sm:$0xff]
    %v465 = vld [vmem:[#allocation2 + $0x8] sm:$0xff]
    %vm466 = vcmp.lt.f32.partialorder %v464, -0.5
    %vm467 = vcmp.lt.f32.partialorder %v465, -0.5
    %vm468 = vcmask 261120
    %v470 = vsel %vm468, %v460, 0
    %v473 = vsel %vm468, %v462, 0
    %v476 = vsel %vm468, %v365, 0
    %v479 = vsel %vm468, %v367, 0
    %v482 = vsel %vm468, %v370, 0
    %v485 = vsel %vm468, %v372, 0
    %487 = vmatpush.xpose.msra.mxu0 0.0
    %488 = vmatpush.xpose.msra.mxu0 0.0
    %489 = vmatpush.xpose.msra.mxu0 0.0
    %490 = vmatpush.xpose.msra.mxu0 0.0
    %491 = vmatpush.xpose.msra.mxu0 0.0
    %492 = vmatpush.xpose.msra.mxu0 0.0
    %493 = vmatpush.xpose.msra.mxu0 0.0
    %494 = vmatpush.xpose.msra.mxu0 0.0
    %495 = vmatpush.xpose.msra.mxu0 0.0
    %496 = vmatpush.xpose.msra.mxu0 0.0
    %497 = vmatpush.xpose.msra.mxu0 0.0
    %498 = vmatpush.xpose.msra.mxu0 0.0
    %499 = vmatpush.xpose.msra.mxu0 %v485
    %500 = vmatpush.xpose.msra.mxu0 %v482
    %501 = vmatpush.xpose.msra.mxu0 %v479
    %502 = vmatpush.xpose.msra.mxu0 %v476
    %503 = vmatmul.f32.gmra.mxu0 %v470
    %v504 = vpop.f32.mrf.mxu0
    %v505 = vadd.f32 0.0, %v504
    %506 = vmatmul.f32.gmra.mxu0 %v473
    %v507 = vpop.f32.mrf.mxu0
    %v508 = vadd.f32 0.0, %v507
    %509 = vdwg.mxu0
    %v510 = vmul.f32 %v505, 0.17677669
    %v511 = vmul.f32 %v508, 0.17677669
    %v512 = vsel %vm466, %v464, %v510
    %v513 = vsel %vm467, %v465, %v511
    %v514 = vsel %vm468, %v512, -inf
    %515 = vmax.xlane.f32.xlu0 %v514
    %v516 = vpop.xlane.xlu0 %515
    %v517 = vsel %vm468, %v513, -inf
    %518 = vmax.xlane.f32.xlu0 %v517
    %v519 = vpop.xlane.xlu0 %518
    %v520 = vsub.f32 %v512, %v516
    %v521 = vsub.f32 %v513, %v519
    %v522 = vmul.f32 %v520, 1.442695
    %v523 = vpow.pop %v522
    %v524 = vmul.f32 %v521, 1.442695
    %v525 = vpow.pop %v524
    %v526 = vsel %vm468, %v523, 0.0
    %527 = vadd.xlane.f32.xlu0 %v526
    %v528 = vpop.xlane.xlu0 %527
    %v529 = vsel %vm468, %v525, 0.0
    %530 = vadd.xlane.f32.xlu0 %v529
    %v531 = vpop.xlane.xlu0 %530
    %v532 = vrcp.pop %v528
    %v533 = vrcp.pop %v531
    %v534 = vmul.f32 %v528, %v532
    %v535 = vmul.f32 %v531, %v533
    %v536 = vsub.f32 2.0, %v534
    %v537 = vsub.f32 2.0, %v535
    %v538 = vmul.f32 %v532, %v536
    %v539 = vmul.f32 %v533, %v537
    %v540 = vmul.f32 %v523, %v538
    %v541 = vmul.f32 %v525, %v539
    %v543 = vsel %vm468, %v540, 0
    %v546 = vsel %vm468, %v541, 0
    %548 = vmatpush.msra.mxu0 0.0
    %549 = vmatpush.msra.mxu0 0.0
    %550 = vmatpush.msra.mxu0 0.0
    %551 = vmatpush.msra.mxu0 0.0
    %552 = vmatpush.msra.mxu0 0.0
    %553 = vmatpush.msra.mxu0 0.0
    %554 = vmatpush.msra.mxu0 0.0
    %555 = vmatpush.msra.mxu0 0.0
    %556 = vmatpush.msra.mxu0 0.0
    %557 = vmatpush.msra.mxu0 0.0
    %558 = vmatpush.msra.mxu0 0.0
    %559 = vmatpush.msra.mxu0 0.0
    %560 = vmatpush.msra.mxu0 %v269
    %561 = vmatpush.msra.mxu0 %v267
    %562 = vmatpush.msra.mxu0 %v264
    %563 = vmatpush.msra.mxu0 %v262
    %564 = vmatmul.f32.gmra.mxu0 %v543
    %v565 = vpop.f32.mrf.mxu0
    %v566 = vadd.f32 0.0, %v565
    %567 = vmatmul.f32.gmra.mxu0 %v546
    %v568 = vpop.f32.mrf.mxu0
    %v569 = vadd.f32 0.0, %v568
    %570 = vdwg.mxu0
    %v571 = vpack.c.bf16 %v569, %v566
    %v572 = vld [vmem:[#allocation14] sm:$0xf]
    %v573 = vld [vmem:[#allocation14 + $0x4] sm:$0xf]
    %v574 = vld [vmem:[#allocation14 + $0x8] sm:$0xf]
    %v575 = vld [vmem:[#allocation14 + $0xc] sm:$0xf]
    %576 = vrot.lane.b32.xlu0 %v460, 96
    %v577 = vpop.permute.xlu0 %576
    %578 = vrot.lane.b32.xlu0 %v462, 96
    %v579 = vpop.permute.xlu0 %578
    %580 = vrot.lane.b32.xlu0 %v365, 96
    %v581 = vpop.permute.xlu0 %580
    %582 = vrot.lane.b32.xlu0 %v367, 96
    %v583 = vpop.permute.xlu0 %582
    %584 = vrot.lane.b32.xlu0 %v370, 96
    %v585 = vpop.permute.xlu0 %584
    %586 = vrot.lane.b32.xlu0 %v372, 96
    %v587 = vpop.permute.xlu0 %586
    %v588 = vsel %vm468, %v577, 0
    %v590 = vsel %vm468, %v579, 0
    %v592 = vsel %vm468, %v581, 0
    %v594 = vsel %vm468, %v583, 0
    %v596 = vsel %vm468, %v585, 0
    %v598 = vsel %vm468, %v587, 0
    %600 = vmatpush.xpose.msra.mxu0 0.0
    %601 = vmatpush.xpose.msra.mxu0 0.0
    %602 = vmatpush.xpose.msra.mxu0 0.0
    %603 = vmatpush.xpose.msra.mxu0 0.0
    %604 = vmatpush.xpose.msra.mxu0 0.0
    %605 = vmatpush.xpose.msra.mxu0 0.0
    %606 = vmatpush.xpose.msra.mxu0 0.0
    %607 = vmatpush.xpose.msra.mxu0 0.0
    %608 = vmatpush.xpose.msra.mxu0 0.0
    %609 = vmatpush.xpose.msra.mxu0 0.0
    %610 = vmatpush.xpose.msra.mxu0 0.0
    %611 = vmatpush.xpose.msra.mxu0 0.0
    %612 = vmatpush.xpose.msra.mxu0 %v598
    %613 = vmatpush.xpose.msra.mxu0 %v596
    %614 = vmatpush.xpose.msra.mxu0 %v594
    %615 = vmatpush.xpose.msra.mxu0 %v592
    %616 = vmatmul.f32.gmra.mxu0 %v588
    %v617 = vpop.f32.mrf.mxu0
    %v618 = vadd.f32 0.0, %v617
    %619 = vmatmul.f32.gmra.mxu0 %v590
    %v620 = vpop.f32.mrf.mxu0
    %v621 = vadd.f32 0.0, %v620
    %622 = vdwg.mxu0
    %v623 = vmul.f32 %v618, 0.17677669
    %v624 = vmul.f32 %v621, 0.17677669
    %v625 = vsel %vm466, %v464, %v623
    %v626 = vsel %vm467, %v465, %v624
    %v627 = vsel %vm468, %v625, -inf
    %628 = vmax.xlane.f32.xlu0 %v627
    %v629 = vpop.xlane.xlu0 %628
    %v630 = vsel %vm468, %v626, -inf
    %631 = vmax.xlane.f32.xlu0 %v630
    %v632 = vpop.xlane.xlu0 %631
    %v633 = vsub.f32 %v625, %v629
    %v634 = vsub.f32 %v626, %v632
    %v635 = vmul.f32 %v633, 1.442695
    %v636 = vpow.pop %v635
    %v637 = vmul.f32 %v634, 1.442695
    %v638 = vpow.pop %v637
    %v639 = vsel %vm468, %v636, 0.0
    %640 = vadd.xlane.f32.xlu0 %v639
    %v641 = vpop.xlane.xlu0 %640
    %v642 = vsel %vm468, %v638, 0.0
    %643 = vadd.xlane.f32.xlu0 %v642
    %v644 = vpop.xlane.xlu0 %643
    %v645 = vrcp.pop %v641
    %v646 = vrcp.pop %v644
    %v647 = vmul.f32 %v641, %v645
    %v648 = vmul.f32 %v644, %v646
    %v649 = vsub.f32 2.0, %v647
    %v650 = vsub.f32 2.0, %v648
    %v651 = vmul.f32 %v645, %v649
    %v652 = vmul.f32 %v646, %v650
    %v653 = vmul.f32 %v636, %v651
    %v654 = vmul.f32 %v638, %v652
    %659 = vrot.lane.b32.xlu0 %v262, 96
    %v660 = vpop.permute.xlu0 %659
    %661 = vrot.lane.b32.xlu0 %v264, 96
    %v662 = vpop.permute.xlu0 %661
    %663 = vrot.lane.b32.xlu0 %v267, 96
    %v664 = vpop.permute.xlu0 %663
    %665 = vrot.lane.b32.xlu0 %v269, 96
    %v666 = vpop.permute.xlu0 %665
    %v672 = vsel %vm468, %v653, 0
    %v675 = vsel %vm468, %v654, 0
    %677 = vmatpush.msra.mxu0 0.0
    %678 = vmatpush.msra.mxu0 0.0
    %679 = vmatpush.msra.mxu0 0.0
    %680 = vmatpush.msra.mxu0 0.0
    %681 = vmatpush.msra.mxu0 0.0
    %682 = vmatpush.msra.mxu0 0.0
    %683 = vmatpush.msra.mxu0 0.0
    %684 = vmatpush.msra.mxu0 0.0
    %685 = vmatpush.msra.mxu0 0.0
    %686 = vmatpush.msra.mxu0 0.0
    %687 = vmatpush.msra.mxu0 0.0
    %688 = vmatpush.msra.mxu0 0.0
    %689 = vmatpush.msra.mxu0 %v666
    %690 = vmatpush.msra.mxu0 %v664
    %691 = vmatpush.msra.mxu0 %v662
    %692 = vmatpush.msra.mxu0 %v660
    %693 = vmatmul.f32.gmra.mxu0 %v672
    %v694 = vpop.f32.mrf.mxu0
    %v695 = vadd.f32 0.0, %v694
    %696 = vmatmul.f32.gmra.mxu0 %v675
    %v697 = vpop.f32.mrf.mxu0
    %v698 = vadd.f32 0.0, %v697
    %699 = vdwg.mxu0
    %v700 = vpack.c.bf16 %v698, %v695
    %v701 = vld [vmem:[#allocation14 + $0x10] sm:$0xf]
    %v702 = vld [vmem:[#allocation14 + $0x14] sm:$0xf]
    %v703 = vld [vmem:[#allocation14 + $0x18] sm:$0xf]
    %v704 = vld [vmem:[#allocation14 + $0x1c] sm:$0xf]
    %v709 = vunpack.c.l.b16 %v701
    %v710 = vunpack.c.l.b16 %v702
    %v711 = vunpack.c.l.b16 %v703
    %v712 = vunpack.c.l.b16 %v704
    %v713 = vpack.c.b16 %v710, %v709
    %v714 = vpack.c.b16 %v712, %v711
    %v718 = vsel %vm468, %v700, 0
    %720 = vmatpush.bf16.msra.mxu0 0
    %721 = vmatpush.bf16.msra.mxu0 0
    %722 = vmatpush.bf16.msra.mxu0 0
    %723 = vmatpush.bf16.msra.mxu0 0
    %724 = vmatpush.bf16.msra.mxu0 0
    %725 = vmatpush.bf16.msra.mxu0 0
    %726 = vmatpush.bf16.msra.mxu0 %v714
    %727 = vmatpush.bf16.msra.mxu0 %v713
    %728 = vmatmul.bf16.gmra.mxu0 %v718
    %v729 = vpop.f32.mrf.mxu0
    %v730 = vadd.f32 0.0, %v729
    %v731 = vpop.f32.mrf.mxu0
    %v732 = vadd.f32 0.0, %v731
    %733 = vdwg.mxu0
    %v738 = vunpack.c.l.b16 %v572
    %v739 = vunpack.c.l.b16 %v573
    %v740 = vunpack.c.l.b16 %v574
    %v741 = vunpack.c.l.b16 %v575
    %v742 = vpack.c.b16 %v739, %v738
    %v743 = vpack.c.b16 %v741, %v740
    %v747 = vsel %vm468, %v571, 0
    %749 = vmatpush.bf16.msra.mxu0 0
    %750 = vmatpush.bf16.msra.mxu0 0
    %751 = vmatpush.bf16.msra.mxu0 0
    %752 = vmatpush.bf16.msra.mxu0 0
    %753 = vmatpush.bf16.msra.mxu0 0
    %754 = vmatpush.bf16.msra.mxu0 0
    %755 = vmatpush.bf16.msra.mxu0 %v743
    %756 = vmatpush.bf16.msra.mxu0 %v742
    %757 = vmatmul.bf16.gmra.mxu0 %v747
    %v758 = vpop.f32.mrf.mxu0
    %v759 = vadd.f32 %v730, %v758
    %v760 = vpop.f32.mrf.mxu0
    %v761 = vadd.f32 %v732, %v760
    %762 = vdwg.mxu0
    %763 = vrot.lane.b32.xlu0 %v460, 64
    %v764 = vpop.permute.xlu0 %763
    %765 = vrot.lane.b32.xlu0 %v462, 64
    %v766 = vpop.permute.xlu0 %765
    %767 = vrot.lane.b32.xlu0 %v365, 64
    %v768 = vpop.permute.xlu0 %767
    %769 = vrot.lane.b32.xlu0 %v367, 64
    %v770 = vpop.permute.xlu0 %769
    %771 = vrot.lane.b32.xlu0 %v370, 64
    %v772 = vpop.permute.xlu0 %771
    %773 = vrot.lane.b32.xlu0 %v372, 64
    %v774 = vpop.permute.xlu0 %773
    %v775 = vsel %vm468, %v764, 0
    %v777 = vsel %vm468, %v766, 0
    %v779 = vsel %vm468, %v768, 0
    %v781 = vsel %vm468, %v770, 0
    %v783 = vsel %vm468, %v772, 0
    %v785 = vsel %vm468, %v774, 0
    %787 = vmatpush.xpose.msra.mxu0 0.0
    %788 = vmatpush.xpose.msra.mxu0 0.0
    %789 = vmatpush.xpose.msra.mxu0 0.0
    %790 = vmatpush.xpose.msra.mxu0 0.0
    %791 = vmatpush.xpose.msra.mxu0 0.0
    %792 = vmatpush.xpose.msra.mxu0 0.0
    %793 = vmatpush.xpose.msra.mxu0 0.0
    %794 = vmatpush.xpose.msra.mxu0 0.0
    %795 = vmatpush.xpose.msra.mxu0 0.0
    %796 = vmatpush.xpose.msra.mxu0 0.0
    %797 = vmatpush.xpose.msra.mxu0 0.0
    %798 = vmatpush.xpose.msra.mxu0 0.0
    %799 = vmatpush.xpose.msra.mxu0 %v785
    %800 = vmatpush.xpose.msra.mxu0 %v783
    %801 = vmatpush.xpose.msra.mxu0 %v781
    %802 = vmatpush.xpose.msra.mxu0 %v779
    %803 = vmatmul.f32.gmra.mxu0 %v775
    %v804 = vpop.f32.mrf.mxu0
    %v805 = vadd.f32 0.0, %v804
    %806 = vmatmul.f32.gmra.mxu0 %v777
    %v807 = vpop.f32.mrf.mxu0
    %v808 = vadd.f32 0.0, %v807
    %809 = vdwg.mxu0
    %v810 = vmul.f32 %v805, 0.17677669
    %v811 = vmul.f32 %v808, 0.17677669
    %v812 = vsel %vm466, %v464, %v810
    %v813 = vsel %vm467, %v465, %v811
    %v814 = vsel %vm468, %v812, -inf
    %815 = vmax.xlane.f32.xlu0 %v814
    %v816 = vpop.xlane.xlu0 %815
    %v817 = vsel %vm468, %v813, -inf
    %818 = vmax.xlane.f32.xlu0 %v817
    %v819 = vpop.xlane.xlu0 %818
    %v820 = vsub.f32 %v812, %v816
    %v821 = vsub.f32 %v813, %v819
    %v822 = vmul.f32 %v820, 1.442695
    %v823 = vpow.pop %v822
    %v824 = vmul.f32 %v821, 1.442695
    %v825 = vpow.pop %v824
    %v826 = vsel %vm468, %v823, 0.0
    %827 = vadd.xlane.f32.xlu0 %v826
    %v828 = vpop.xlane.xlu0 %827
    %v829 = vsel %vm468, %v825, 0.0
    %830 = vadd.xlane.f32.xlu0 %v829
    %v831 = vpop.xlane.xlu0 %830
    %v832 = vrcp.pop %v828
    %v833 = vrcp.pop %v831
    %v834 = vmul.f32 %v828, %v832
    %v835 = vmul.f32 %v831, %v833
    %v836 = vsub.f32 2.0, %v834
    %v837 = vsub.f32 2.0, %v835
    %v838 = vmul.f32 %v832, %v836
    %v839 = vmul.f32 %v833, %v837
    %v840 = vmul.f32 %v823, %v838
    %v841 = vmul.f32 %v825, %v839
    %842 = vrot.lane.b32.xlu0 %v262, 64
    %v843 = vpop.permute.xlu0 %842
    %844 = vrot.lane.b32.xlu0 %v264, 64
    %v845 = vpop.permute.xlu0 %844
    %846 = vrot.lane.b32.xlu0 %v267, 64
    %v847 = vpop.permute.xlu0 %846
    %848 = vrot.lane.b32.xlu0 %v269, 64
    %v849 = vpop.permute.xlu0 %848
    %v855 = vsel %vm468, %v840, 0
    %v858 = vsel %vm468, %v841, 0
    %860 = vmatpush.msra.mxu0 0.0
    %861 = vmatpush.msra.mxu0 0.0
    %862 = vmatpush.msra.mxu0 0.0
    %863 = vmatpush.msra.mxu0 0.0
    %864 = vmatpush.msra.mxu0 0.0
    %865 = vmatpush.msra.mxu0 0.0
    %866 = vmatpush.msra.mxu0 0.0
    %867 = vmatpush.msra.mxu0 0.0
    %868 = vmatpush.msra.mxu0 0.0
    %869 = vmatpush.msra.mxu0 0.0
    %870 = vmatpush.msra.mxu0 0.0
    %871 = vmatpush.msra.mxu0 0.0
    %872 = vmatpush.msra.mxu0 %v849
    %873 = vmatpush.msra.mxu0 %v847
    %874 = vmatpush.msra.mxu0 %v845
    %875 = vmatpush.msra.mxu0 %v843
    %876 = vmatmul.f32.gmra.mxu0 %v855
    %v877 = vpop.f32.mrf.mxu0
    %v878 = vadd.f32 0.0, %v877
    %879 = vmatmul.f32.gmra.mxu0 %v858
    %v880 = vpop.f32.mrf.mxu0
    %v881 = vadd.f32 0.0, %v880
    %882 = vdwg.mxu0
    %v883 = vpack.c.bf16 %v881, %v878
    %v884 = vld [vmem:[#allocation14 + $0x20] sm:$0xf]
    %v885 = vld [vmem:[#allocation14 + $0x24] sm:$0xf]
    %v886 = vld [vmem:[#allocation14 + $0x28] sm:$0xf]
    %v887 = vld [vmem:[#allocation14 + $0x2c] sm:$0xf]
    %v892 = vunpack.c.l.b16 %v884
    %v893 = vunpack.c.l.b16 %v885
    %v894 = vunpack.c.l.b16 %v886
    %v895 = vunpack.c.l.b16 %v887
    %v896 = vpack.c.b16 %v893, %v892
    %v897 = vpack.c.b16 %v895, %v894
    %v901 = vsel %vm468, %v883, 0
    %903 = vmatpush.bf16.msra.mxu0 0
    %904 = vmatpush.bf16.msra.mxu0 0
    %905 = vmatpush.bf16.msra.mxu0 0
    %906 = vmatpush.bf16.msra.mxu0 0
    %907 = vmatpush.bf16.msra.mxu0 0
    %908 = vmatpush.bf16.msra.mxu0 0
    %909 = vmatpush.bf16.msra.mxu0 %v897
    %910 = vmatpush.bf16.msra.mxu0 %v896
    %911 = vmatmul.bf16.gmra.mxu0 %v901
    %v912 = vpop.f32.mrf.mxu0
    %v913 = vadd.f32 0.0, %v912
    %v914 = vpop.f32.mrf.mxu0
    %v915 = vadd.f32 0.0, %v914
    %916 = vdwg.mxu0
    %v917 = vadd.f32 %v759, %v913
    %v918 = vadd.f32 %v761, %v915
    %919 = vrot.lane.b32.xlu0 %v460, 32
    %v920 = vpop.permute.xlu0 %919
    %921 = vrot.lane.b32.xlu0 %v462, 32
    %v922 = vpop.permute.xlu0 %921
    %923 = vrot.lane.b32.xlu0 %v365, 32
    %v924 = vpop.permute.xlu0 %923
    %925 = vrot.lane.b32.xlu0 %v367, 32
    %v926 = vpop.permute.xlu0 %925
    %927 = vrot.lane.b32.xlu0 %v370, 32
    %v928 = vpop.permute.xlu0 %927
    %929 = vrot.lane.b32.xlu0 %v372, 32
    %v930 = vpop.permute.xlu0 %929
    %v931 = vsel %vm468, %v920, 0
    %v933 = vsel %vm468, %v922, 0
    %v935 = vsel %vm468, %v924, 0
    %v937 = vsel %vm468, %v926, 0
    %v939 = vsel %vm468, %v928, 0
    %v941 = vsel %vm468, %v930, 0
    %943 = vmatpush.xpose.msra.mxu0 0.0
    %944 = vmatpush.xpose.msra.mxu0 0.0
    %945 = vmatpush.xpose.msra.mxu0 0.0
    %946 = vmatpush.xpose.msra.mxu0 0.0
    %947 = vmatpush.xpose.msra.mxu0 0.0
    %948 = vmatpush.xpose.msra.mxu0 0.0
    %949 = vmatpush.xpose.msra.mxu0 0.0
    %950 = vmatpush.xpose.msra.mxu0 0.0
    %951 = vmatpush.xpose.msra.mxu0 0.0
    %952 = vmatpush.xpose.msra.mxu0 0.0
    %953 = vmatpush.xpose.msra.mxu0 0.0
    %954 = vmatpush.xpose.msra.mxu0 0.0
    %955 = vmatpush.xpose.msra.mxu0 %v941
    %956 = vmatpush.xpose.msra.mxu0 %v939
    %957 = vmatpush.xpose.msra.mxu0 %v937
    %958 = vmatpush.xpose.msra.mxu0 %v935
    %959 = vmatmul.f32.gmra.mxu0 %v931
    %v960 = vpop.f32.mrf.mxu0
    %v961 = vadd.f32 0.0, %v960
    %962 = vmatmul.f32.gmra.mxu0 %v933
    %v963 = vpop.f32.mrf.mxu0
    %v964 = vadd.f32 0.0, %v963
    %965 = vdwg.mxu0
    %v966 = vmul.f32 %v961, 0.17677669
    %v967 = vmul.f32 %v964, 0.17677669
    %v968 = vsel %vm466, %v464, %v966
    %v969 = vsel %vm467, %v465, %v967
    %v970 = vsel %vm468, %v968, -inf
    %971 = vmax.xlane.f32.xlu0 %v970
    %v972 = vpop.xlane.xlu0 %971
    %v973 = vsel %vm468, %v969, -inf
    %974 = vmax.xlane.f32.xlu0 %v973
    %v975 = vpop.xlane.xlu0 %974
    %v976 = vsub.f32 %v968, %v972
    %v977 = vsub.f32 %v969, %v975
    %v978 = vmul.f32 %v976, 1.442695
    %v979 = vpow.pop %v978
    %v980 = vmul.f32 %v977, 1.442695
    %v981 = vpow.pop %v980
    %v982 = vsel %vm468, %v979, 0.0
    %983 = vadd.xlane.f32.xlu0 %v982
    %v984 = vpop.xlane.xlu0 %983
    %v985 = vsel %vm468, %v981, 0.0
    %986 = vadd.xlane.f32.xlu0 %v985
    %v987 = vpop.xlane.xlu0 %986
    %v988 = vrcp.pop %v984
    %v989 = vrcp.pop %v987
    %v990 = vmul.f32 %v984, %v988
    %v991 = vmul.f32 %v987, %v989
    %v992 = vsub.f32 2.0, %v990
    %v993 = vsub.f32 2.0, %v991
    %v994 = vmul.f32 %v988, %v992
    %v995 = vmul.f32 %v989, %v993
    %v996 = vmul.f32 %v979, %v994
    %v997 = vmul.f32 %v981, %v995
    %998 = vrot.lane.b32.xlu0 %v262, 32
    %v999 = vpop.permute.xlu0 %998
    %1000 = vrot.lane.b32.xlu0 %v264, 32
    %v1001 = vpop.permute.xlu0 %1000
    %1002 = vrot.lane.b32.xlu0 %v267, 32
    %v1003 = vpop.permute.xlu0 %1002
    %1004 = vrot.lane.b32.xlu0 %v269, 32
    %v1005 = vpop.permute.xlu0 %1004
    %v1011 = vsel %vm468, %v996, 0
    %v1014 = vsel %vm468, %v997, 0
    %1016 = vmatpush.msra.mxu0 0.0
    %1017 = vmatpush.msra.mxu0 0.0
    %1018 = vmatpush.msra.mxu0 0.0
    %1019 = vmatpush.msra.mxu0 0.0
    %1020 = vmatpush.msra.mxu0 0.0
    %1021 = vmatpush.msra.mxu0 0.0
    %1022 = vmatpush.msra.mxu0 0.0
    %1023 = vmatpush.msra.mxu0 0.0
    %1024 = vmatpush.msra.mxu0 0.0
    %1025 = vmatpush.msra.mxu0 0.0
    %1026 = vmatpush.msra.mxu0 0.0
    %1027 = vmatpush.msra.mxu0 0.0
    %1028 = vmatpush.msra.mxu0 %v1005
    %1029 = vmatpush.msra.mxu0 %v1003
    %1030 = vmatpush.msra.mxu0 %v1001
    %1031 = vmatpush.msra.mxu0 %v999
    %1032 = vmatmul.f32.gmra.mxu0 %v1011
    %v1033 = vpop.f32.mrf.mxu0
    %v1034 = vadd.f32 0.0, %v1033
    %1035 = vmatmul.f32.gmra.mxu0 %v1014
    %v1036 = vpop.f32.mrf.mxu0
    %v1037 = vadd.f32 0.0, %v1036
    %1038 = vdwg.mxu0
    %v1039 = vpack.c.bf16 %v1037, %v1034
    %v1040 = vld [vmem:[#allocation14 + $0x30] sm:$0xf]
    %v1041 = vld [vmem:[#allocation14 + $0x34] sm:$0xf]
    %v1042 = vld [vmem:[#allocation14 + $0x38] sm:$0xf]
    %v1043 = vld [vmem:[#allocation14 + $0x3c] sm:$0xf]
    %v1048 = vunpack.c.l.b16 %v1040
    %v1049 = vunpack.c.l.b16 %v1041
    %v1050 = vunpack.c.l.b16 %v1042
    %v1051 = vunpack.c.l.b16 %v1043
    %v1052 = vpack.c.b16 %v1049, %v1048
    %v1053 = vpack.c.b16 %v1051, %v1050
    %v1057 = vsel %vm468, %v1039, 0
    %1059 = vmatpush.bf16.msra.mxu0 0
    %1060 = vmatpush.bf16.msra.mxu0 0
    %1061 = vmatpush.bf16.msra.mxu0 0
    %1062 = vmatpush.bf16.msra.mxu0 0
    %1063 = vmatpush.bf16.msra.mxu0 0
    %1064 = vmatpush.bf16.msra.mxu0 0
    %1065 = vmatpush.bf16.msra.mxu0 %v1053
    %1066 = vmatpush.bf16.msra.mxu0 %v1052
    %1067 = vmatmul.bf16.gmra.mxu0 %v1057
    %v1068 = vpop.f32.mrf.mxu0
    %v1069 = vadd.f32 0.0, %v1068
    %v1070 = vpop.f32.mrf.mxu0
    %v1071 = vadd.f32 0.0, %v1070
    %1072 = vdwg.mxu0
    %v1073 = vadd.f32 %v917, %v1069
    %v1074 = vadd.f32 %v918, %v1071
    %v1075 = vld [vmem:[%s11] sm:$0x1]
    %v1077 = vperm.slane %v1075, 0
    %v1079 = vadd.f32 %v1073, %v1077
    %v1080 = vadd.f32 %v1074, %v1077
    %1081 = vst [vmem:[#allocation16] sm:$0xff] %v1079
    %1082 = vst [vmem:[#allocation16 + $0x8] sm:$0xff] %v1080
    // Predicated region
    $region82: #{tpu_custom_call.1} parent=1 // pred_check
      _
    $region83: #{tpu_custom_call.1} parent=1 // pred_check_branch
      %1084 = sbr.rel (0) target = $region85
    $region84: #{tpu_custom_call.1} parent=1 // pred_region
      %1086 = vsyncadd [#allocation4], 0
      %s1087 = sshll.u32 [#allocation16], 4
      %s1088 = int_to_ptr.vmem [resolvable:$true] %s1087
      %s1089 = sshll.u32 %s12, 4
      %s1090 = int_to_ptr.hbm [resolvable:$true] %s1089
      %1095 = dma.vmem_to_hbm [thread:$0]  %s1088, 256, %s1090, [#allocation4], 128, 128, 8
    $region85: #{tpu_custom_call.1} parent=1 // pred_fallthru
      _
    // Predicated region
    $region86: #{tpu_custom_call.1} parent=1 // pred_check
      _
    $region87: #{tpu_custom_call.1} parent=1 // pred_check_branch
      %1097 = sbr.rel (0) target = $region89
    $region88: #{tpu_custom_call.1} parent=1 // pred_region
      %1099 = dma.done [#allocation4], 256
    $region89: #{tpu_custom_call.1} parent=1 // pred_fallthru
      _
    %1100 = vsyncpa [#allocation3], 1
    %1101 = vsyncpa [#allocation6], 1
    %1102 = vsyncpa [#allocation9], 1
    %1103 = vsyncpa [#allocation12], 1
    %1104 = vsyncpa [#allocation15], 1
    %1105 = vsyncpa [#allocation4], 1

</llo_original>
